<compile_context>
chip_gen: v7x
topology: tpu7x:2x2x1
jax: 0.10.0
libtpu: 0.0.40
codegen_flags: <defaults>
</compile_context>

<pallas_src>
from functools import partial

import jax
import jax.numpy as jnp
from jax.experimental import pallas as pl
from jax.experimental.pallas import tpu as pltpu


def positions_mlp_kernel(params_ref, pos_ref, mask_ref, out_ref, *,
                         hidden, eps, inv_n):
    # params_ref: (3*H + 1,) f32 in SMEM, packed as [w1 | b1 | w2 | b2]
    # pos_ref   : (D, TB, Np)  -- nodes on lanes, batch rows on sublanes
    # mask_ref  : (1, TB, Np)
    # out_ref   : (D, TB, Np)
    pos = pos_ref[...].astype(jnp.float32)          # compute in f32 (v5e has no bf16 VALU)
    mask = mask_ref[0].astype(jnp.float32)          # (TB, Np); padded lanes/rows are 0

    D = pos.shape[0]
    H = hidden

    # squared norm over the tiny coordinate axis: leading-dim slabs, pure VPU FMAs
    sq = pos[0] * pos[0]
    for d in range(1, D):
        sq = sq + pos[d] * pos[d]
    norm = jnp.sqrt(sq)                             # (TB, Np)

    # 1 -> H -> 1 MLP without the MXU and without materializing (H, TB, Np):
    #   acc += w2[h] * relu(w1[h] * norm + b1[h]),  statically unrolled over H,
    # with w1/b1/w2 read as SMEM scalars (sregs), broadcast by the VPU.
    acc = jnp.zeros_like(norm)
    for h in range(H):
        w1h = params_ref[h]
        b1h = params_ref[H + h]
        w2h = params_ref[2 * H + h]
        acc = acc + w2h * jnp.maximum(w1h * norm + b1h, 0.0)
    new_norm = acc + params_ref[3 * H]              # (TB, Np)

    # EUP approximate reciprocal + one Newton refinement (rel err ~1e-7).
    # Padded / masked rows: norm = 0 -> inv ~ 1/eps (finite, eps > 0), then
    # multiplied by mask = 0, so no NaN and exact zeros for padding.
    denom = norm + eps
    inv = pl.reciprocal(denom, approx=True)
    inv = inv * (2.0 - denom * inv)
    scale = new_norm * inv * mask                   # (TB, Np)

    # per-graph mean over ALL N true nodes (padded lanes contribute exactly 0;
    # inv_n = 1/N uses the true N, matching torch.mean over dim=1).
    for d in range(D):
        npd = pos[d] * scale                        # (TB, Np)
        mean = jnp.sum(npd, axis=-1, keepdims=True) * inv_n   # (TB, 1)
        out_ref[d] = (npd - mean).astype(out_ref.dtype)


def _choose_tb(B, Np, D, target_block_bytes):
    """Pick TB (multiple of 8): ~target bytes of pos per step, >=2 steps if possible."""
    per_row = Np * D * 4
    bp8 = ((B + 7) // 8) * 8
    tb = max(8, (target_block_bytes // per_row) // 8 * 8)
    tb = min(tb, bp8)
    if bp8 // tb < 2 and bp8 >= 16:       # keep >=2 grid steps for v7x dual TensorCores
        tb = max(8, (bp8 // 2) // 8 * 8)
    return int(tb)


def positions_mlp(pos, node_mask, w1, b1, w2, b2, eps=1e-5,
                  target_block_bytes=1 << 20):
    B, N, D = pos.shape
    H = w1.shape[-1]

    Np = ((N + 127) // 128) * 128
    TB = _choose_tb(B, Np, D, target_block_bytes)
    Bp = ((B + TB - 1) // TB) * TB

    # channel-first, lane-dense layout: (B, N, D) -> (D, Bp, Np); pad = 0.
    # TODO(synk): keep positions channel-first (D-major) across the surrounding
    # model to eliminate these transposes/pads -- they are extra HBM passes
    # comparable to this low-FLOP kernel's own runtime.
    pos_t = jnp.transpose(pos, (2, 0, 1))                               # (D, B, N)
    pos_t = jnp.pad(pos_t, ((0, 0), (0, Bp - B), (0, Np - N)))
    mask_t = node_mask.astype(jnp.float32).reshape(1, B, N)
    mask_t = jnp.pad(mask_t, ((0, 0), (0, Bp - B), (0, Np - N)))

    # pack MLP params into one SMEM scalar vector: [w1 (H) | b1 (H) | w2 (H) | b2 (1)]
    params = jnp.concatenate([
        w1.astype(jnp.float32).reshape(H),
        b1.astype(jnp.float32).reshape(H),
        w2.astype(jnp.float32).reshape(H),
        b2.astype(jnp.float32).reshape(1),
    ])

    kernel = partial(positions_mlp_kernel, hidden=H, eps=eps, inv_n=1.0 / N)

    # explicit VMEM budget (double-buffered pos + out + mask), safe on v5e/v6e/v7x
    block_bytes = (2 * D * TB * Np + TB * Np) * 4
    vmem_limit = int(min(48 << 20, max(32 << 20, 6 * block_bytes)))

    out_t = pl.pallas_call(
        kernel,
        out_shape=jax.ShapeDtypeStruct((D, Bp, Np), pos.dtype),
        grid_spec=pltpu.PrefetchScalarGridSpec(
            num_scalar_prefetch=0,
            grid=(Bp // TB,),
            in_specs=[
                pl.BlockSpec(memory_space=pltpu.MemorySpace.SMEM),        # packed MLP params
                pl.BlockSpec((D, TB, Np), lambda g: (0, g, 0)),           # pos  (D, TB, Np)
                pl.BlockSpec((1, TB, Np), lambda g: (0, g, 0)),           # node mask
            ],
            out_specs=pl.BlockSpec((D, TB, Np), lambda g: (0, g, 0)),
        ),
        compiler_params=pltpu.CompilerParams(
            dimension_semantics=("parallel",),
            vmem_limit_bytes=vmem_limit),
    )(params, pos_t, mask_t)

    out = out_t[:, :B, :N]                   # (D, B, N)
    return jnp.transpose(out, (1, 2, 0))     # (B, N, D)


def positions_mlp_ref(pos, node_mask, w1, b1, w2, b2, eps=1e-5):
    # pure-JAX reference mirroring the PyTorch forward
    norm = jnp.linalg.norm(pos, axis=-1, keepdims=True)
    h = jnp.maximum(norm @ w1 + b1, 0.0)
    new_norm = h @ w2 + b2
    new_pos = pos * new_norm / (norm + eps)
    new_pos = new_pos * node_mask[..., None]
    new_pos = new_pos - jnp.mean(new_pos, axis=1, keepdims=True)
    return new_pos


if __name__ == "__main__":
    B, N, D, H = 2, 8, 3, 32
    eps = 1e-5

    key = jax.random.PRNGKey(0)
    k_pos, k_mask, k_w1, k_b1, k_w2, k_b2 = jax.random.split(key, 6)

    pos = jax.random.normal(k_pos, (B, N, D), dtype=jnp.float32)
    node_mask = (jax.random.uniform(k_mask, (B, N)) > 0.3).astype(jnp.float32)

    # Deterministic param init mimicking nn.Linear default: U(-1/sqrt(fan_in), 1/sqrt(fan_in))
    w1 = jax.random.uniform(k_w1, (1, H), minval=-1.0, maxval=1.0, dtype=jnp.float32)
    b1 = jax.random.uniform(k_b1, (H,), minval=-1.0, maxval=1.0, dtype=jnp.float32)
    bound2 = 1.0 / jnp.sqrt(H)
    w2 = jax.random.uniform(k_w2, (H, 1), minval=-bound2, maxval=bound2, dtype=jnp.float32)
    b2 = jax.random.uniform(k_b2, (1,), minval=-bound2, maxval=bound2, dtype=jnp.float32)

    out = positions_mlp(pos, node_mask, w1, b1, w2, b2, eps=eps)
    out = jax.block_until_ready(out)

    ref = positions_mlp_ref(pos, node_mask, w1, b1, w2, b2, eps=eps)
    assert out.shape == (B, N, D)
    # small slack over 1e-5 for the approx+Newton reciprocal and H-accumulation order
    assert jnp.allclose(out, ref, atol=2e-5, rtol=2e-5), "mismatch vs reference"

    print("KERNEL_OK")
</pallas_src>

<mosaic_0001>
module attributes {stable_mosaic.version = 11 : i64} {
  func.func @positions_mlp_kernel(%arg0: i32, %arg1: memref<97xf32, #tpu.memory_space<smem>>, %arg2: memref<3x8x128xf32, #tpu.memory_space<vmem>>, %arg3: memref<1x8x128xf32, #tpu.memory_space<vmem>>, %arg4: memref<3x8x128xf32, #tpu.memory_space<vmem>>) attributes {dimension_semantics = [#tpu.dimension_semantics<parallel>], iteration_bounds = array<i64: 1>, scalar_prefetch = 0 : i64, scratch_operands = 0 : i64, tpu.core_type = #tpu.core_type<tc>, window_params = [{transform_indices = @transform_0, window_bounds = array<i64: 97>}, {transform_indices = @transform_1, window_bounds = array<i64: 3, 8, 128>}, {transform_indices = @transform_2, window_bounds = array<i64: 1, 8, 128>}, {transform_indices = @transform_3, window_bounds = array<i64: 3, 8, 128>}]} {
    %c0 = arith.constant 0 : index
    %c0_0 = arith.constant 0 : index
    %c0_1 = arith.constant 0 : index
    %0 = vector.load %arg2[%c0, %c0_0, %c0_1] : memref<3x8x128xf32, #tpu.memory_space<vmem>>, vector<3x8x128xf32>
    %c0_2 = arith.constant 0 : index
    %c0_3 = arith.constant 0 : index
    %c0_4 = arith.constant 0 : index
    %1 = vector.load %arg3[%c0_2, %c0_3, %c0_4] : memref<1x8x128xf32, #tpu.memory_space<vmem>>, vector<1x8x128xf32>
    %2 = vector.shape_cast %1 : vector<1x8x128xf32> to vector<8x128xf32>
    %3 = vector.extract_strided_slice %0 {offsets = [0, 0, 0], sizes = [1, 8, 128], strides = [1, 1, 1]} : vector<3x8x128xf32> to vector<1x8x128xf32>
    %4 = vector.shape_cast %3 : vector<1x8x128xf32> to vector<8x128xf32>
    %5 = vector.extract_strided_slice %0 {offsets = [0, 0, 0], sizes = [1, 8, 128], strides = [1, 1, 1]} : vector<3x8x128xf32> to vector<1x8x128xf32>
    %6 = vector.shape_cast %5 : vector<1x8x128xf32> to vector<8x128xf32>
    %7 = arith.mulf %4, %6 : vector<8x128xf32>
    %8 = vector.extract_strided_slice %0 {offsets = [1, 0, 0], sizes = [1, 8, 128], strides = [1, 1, 1]} : vector<3x8x128xf32> to vector<1x8x128xf32>
    %9 = vector.shape_cast %8 : vector<1x8x128xf32> to vector<8x128xf32>
    %10 = vector.extract_strided_slice %0 {offsets = [1, 0, 0], sizes = [1, 8, 128], strides = [1, 1, 1]} : vector<3x8x128xf32> to vector<1x8x128xf32>
    %11 = vector.shape_cast %10 : vector<1x8x128xf32> to vector<8x128xf32>
    %12 = arith.mulf %9, %11 : vector<8x128xf32>
    %13 = arith.addf %7, %12 : vector<8x128xf32>
    %14 = vector.extract_strided_slice %0 {offsets = [2, 0, 0], sizes = [1, 8, 128], strides = [1, 1, 1]} : vector<3x8x128xf32> to vector<1x8x128xf32>
    %15 = vector.shape_cast %14 : vector<1x8x128xf32> to vector<8x128xf32>
    %16 = vector.extract_strided_slice %0 {offsets = [2, 0, 0], sizes = [1, 8, 128], strides = [1, 1, 1]} : vector<3x8x128xf32> to vector<1x8x128xf32>
    %17 = vector.shape_cast %16 : vector<1x8x128xf32> to vector<8x128xf32>
    %18 = arith.mulf %15, %17 : vector<8x128xf32>
    %19 = arith.addf %13, %18 : vector<8x128xf32>
    %20 = math.sqrt %19 : vector<8x128xf32>
    %cst = arith.constant 0.000000e+00 : f32
    %21 = vector.broadcast %cst : f32 to vector<8x128xf32>
    %c0_5 = arith.constant 0 : index
    %22 = memref.load %arg1[%c0_5] : memref<97xf32, #tpu.memory_space<smem>>
    %c32 = arith.constant 32 : index
    %23 = memref.load %arg1[%c32] : memref<97xf32, #tpu.memory_space<smem>>
    %c64 = arith.constant 64 : index
    %24 = memref.load %arg1[%c64] : memref<97xf32, #tpu.memory_space<smem>>
    %25 = vector.broadcast %22 : f32 to vector<8x128xf32>
    %26 = arith.mulf %25, %20 : vector<8x128xf32>
    %27 = vector.broadcast %23 : f32 to vector<8x128xf32>
    %28 = arith.addf %26, %27 : vector<8x128xf32>
    %cst_6 = arith.constant 0.000000e+00 : f32
    %29 = vector.broadcast %cst_6 : f32 to vector<8x128xf32>
    %30 = arith.maximumf %28, %29 : vector<8x128xf32>
    %31 = vector.broadcast %24 : f32 to vector<8x128xf32>
    %32 = arith.mulf %31, %30 : vector<8x128xf32>
    %33 = arith.addf %21, %32 : vector<8x128xf32>
    %c1 = arith.constant 1 : index
    %34 = memref.load %arg1[%c1] : memref<97xf32, #tpu.memory_space<smem>>
    %c33 = arith.constant 33 : index
    %35 = memref.load %arg1[%c33] : memref<97xf32, #tpu.memory_space<smem>>
    %c65 = arith.constant 65 : index
    %36 = memref.load %arg1[%c65] : memref<97xf32, #tpu.memory_space<smem>>
    %37 = vector.broadcast %34 : f32 to vector<8x128xf32>
    %38 = arith.mulf %37, %20 : vector<8x128xf32>
    %39 = vector.broadcast %35 : f32 to vector<8x128xf32>
    %40 = arith.addf %38, %39 : vector<8x128xf32>
    %cst_7 = arith.constant 0.000000e+00 : f32
    %41 = vector.broadcast %cst_7 : f32 to vector<8x128xf32>
    %42 = arith.maximumf %40, %41 : vector<8x128xf32>
    %43 = vector.broadcast %36 : f32 to vector<8x128xf32>
    %44 = arith.mulf %43, %42 : vector<8x128xf32>
    %45 = arith.addf %33, %44 : vector<8x128xf32>
    %c2 = arith.constant 2 : index
    %46 = memref.load %arg1[%c2] : memref<97xf32, #tpu.memory_space<smem>>
    %c34 = arith.constant 34 : index
    %47 = memref.load %arg1[%c34] : memref<97xf32, #tpu.memory_space<smem>>
    %c66 = arith.constant 66 : index
    %48 = memref.load %arg1[%c66] : memref<97xf32, #tpu.memory_space<smem>>
    %49 = vector.broadcast %46 : f32 to vector<8x128xf32>
    %50 = arith.mulf %49, %20 : vector<8x128xf32>
    %51 = vector.broadcast %47 : f32 to vector<8x128xf32>
    %52 = arith.addf %50, %51 : vector<8x128xf32>
    %cst_8 = arith.constant 0.000000e+00 : f32
    %53 = vector.broadcast %cst_8 : f32 to vector<8x128xf32>
    %54 = arith.maximumf %52, %53 : vector<8x128xf32>
    %55 = vector.broadcast %48 : f32 to vector<8x128xf32>
    %56 = arith.mulf %55, %54 : vector<8x128xf32>
    %57 = arith.addf %45, %56 : vector<8x128xf32>
    %c3 = arith.constant 3 : index
    %58 = memref.load %arg1[%c3] : memref<97xf32, #tpu.memory_space<smem>>
    %c35 = arith.constant 35 : index
    %59 = memref.load %arg1[%c35] : memref<97xf32, #tpu.memory_space<smem>>
    %c67 = arith.constant 67 : index
    %60 = memref.load %arg1[%c67] : memref<97xf32, #tpu.memory_space<smem>>
    %61 = vector.broadcast %58 : f32 to vector<8x128xf32>
    %62 = arith.mulf %61, %20 : vector<8x128xf32>
    %63 = vector.broadcast %59 : f32 to vector<8x128xf32>
    %64 = arith.addf %62, %63 : vector<8x128xf32>
    %cst_9 = arith.constant 0.000000e+00 : f32
    %65 = vector.broadcast %cst_9 : f32 to vector<8x128xf32>
    %66 = arith.maximumf %64, %65 : vector<8x128xf32>
    %67 = vector.broadcast %60 : f32 to vector<8x128xf32>
    %68 = arith.mulf %67, %66 : vector<8x128xf32>
    %69 = arith.addf %57, %68 : vector<8x128xf32>
    %c4 = arith.constant 4 : index
    %70 = memref.load %arg1[%c4] : memref<97xf32, #tpu.memory_space<smem>>
    %c36 = arith.constant 36 : index
    %71 = memref.load %arg1[%c36] : memref<97xf32, #tpu.memory_space<smem>>
    %c68 = arith.constant 68 : index
    %72 = memref.load %arg1[%c68] : memref<97xf32, #tpu.memory_space<smem>>
    %73 = vector.broadcast %70 : f32 to vector<8x128xf32>
    %74 = arith.mulf %73, %20 : vector<8x128xf32>
    %75 = vector.broadcast %71 : f32 to vector<8x128xf32>
    %76 = arith.addf %74, %75 : vector<8x128xf32>
    %cst_10 = arith.constant 0.000000e+00 : f32
    %77 = vector.broadcast %cst_10 : f32 to vector<8x128xf32>
    %78 = arith.maximumf %76, %77 : vector<8x128xf32>
    %79 = vector.broadcast %72 : f32 to vector<8x128xf32>
    %80 = arith.mulf %79, %78 : vector<8x128xf32>
    %81 = arith.addf %69, %80 : vector<8x128xf32>
    %c5 = arith.constant 5 : index
    %82 = memref.load %arg1[%c5] : memref<97xf32, #tpu.memory_space<smem>>
    %c37 = arith.constant 37 : index
    %83 = memref.load %arg1[%c37] : memref<97xf32, #tpu.memory_space<smem>>
    %c69 = arith.constant 69 : index
    %84 = memref.load %arg1[%c69] : memref<97xf32, #tpu.memory_space<smem>>
    %85 = vector.broadcast %82 : f32 to vector<8x128xf32>
    %86 = arith.mulf %85, %20 : vector<8x128xf32>
    %87 = vector.broadcast %83 : f32 to vector<8x128xf32>
    %88 = arith.addf %86, %87 : vector<8x128xf32>
    %cst_11 = arith.constant 0.000000e+00 : f32
    %89 = vector.broadcast %cst_11 : f32 to vector<8x128xf32>
    %90 = arith.maximumf %88, %89 : vector<8x128xf32>
    %91 = vector.broadcast %84 : f32 to vector<8x128xf32>
    %92 = arith.mulf %91, %90 : vector<8x128xf32>
    %93 = arith.addf %81, %92 : vector<8x128xf32>
    %c6 = arith.constant 6 : index
    %94 = memref.load %arg1[%c6] : memref<97xf32, #tpu.memory_space<smem>>
    %c38 = arith.constant 38 : index
    %95 = memref.load %arg1[%c38] : memref<97xf32, #tpu.memory_space<smem>>
    %c70 = arith.constant 70 : index
    %96 = memref.load %arg1[%c70] : memref<97xf32, #tpu.memory_space<smem>>
    %97 = vector.broadcast %94 : f32 to vector<8x128xf32>
    %98 = arith.mulf %97, %20 : vector<8x128xf32>
    %99 = vector.broadcast %95 : f32 to vector<8x128xf32>
    %100 = arith.addf %98, %99 : vector<8x128xf32>
    %cst_12 = arith.constant 0.000000e+00 : f32
    %101 = vector.broadcast %cst_12 : f32 to vector<8x128xf32>
    %102 = arith.maximumf %100, %101 : vector<8x128xf32>
    %103 = vector.broadcast %96 : f32 to vector<8x128xf32>
    %104 = arith.mulf %103, %102 : vector<8x128xf32>
    %105 = arith.addf %93, %104 : vector<8x128xf32>
    %c7 = arith.constant 7 : index
    %106 = memref.load %arg1[%c7] : memref<97xf32, #tpu.memory_space<smem>>
    %c39 = arith.constant 39 : index
    %107 = memref.load %arg1[%c39] : memref<97xf32, #tpu.memory_space<smem>>
    %c71 = arith.constant 71 : index
    %108 = memref.load %arg1[%c71] : memref<97xf32, #tpu.memory_space<smem>>
    %109 = vector.broadcast %106 : f32 to vector<8x128xf32>
    %110 = arith.mulf %109, %20 : vector<8x128xf32>
    %111 = vector.broadcast %107 : f32 to vector<8x128xf32>
    %112 = arith.addf %110, %111 : vector<8x128xf32>
    %cst_13 = arith.constant 0.000000e+00 : f32
    %113 = vector.broadcast %cst_13 : f32 to vector<8x128xf32>
    %114 = arith.maximumf %112, %113 : vector<8x128xf32>
    %115 = vector.broadcast %108 : f32 to vector<8x128xf32>
    %116 = arith.mulf %115, %114 : vector<8x128xf32>
    %117 = arith.addf %105, %116 : vector<8x128xf32>
    %c8 = arith.constant 8 : index
    %118 = memref.load %arg1[%c8] : memref<97xf32, #tpu.memory_space<smem>>
    %c40 = arith.constant 40 : index
    %119 = memref.load %arg1[%c40] : memref<97xf32, #tpu.memory_space<smem>>
    %c72 = arith.constant 72 : index
    %120 = memref.load %arg1[%c72] : memref<97xf32, #tpu.memory_space<smem>>
    %121 = vector.broadcast %118 : f32 to vector<8x128xf32>
    %122 = arith.mulf %121, %20 : vector<8x128xf32>
    %123 = vector.broadcast %119 : f32 to vector<8x128xf32>
    %124 = arith.addf %122, %123 : vector<8x128xf32>
    %cst_14 = arith.constant 0.000000e+00 : f32
    %125 = vector.broadcast %cst_14 : f32 to vector<8x128xf32>
    %126 = arith.maximumf %124, %125 : vector<8x128xf32>
    %127 = vector.broadcast %120 : f32 to vector<8x128xf32>
    %128 = arith.mulf %127, %126 : vector<8x128xf32>
    %129 = arith.addf %117, %128 : vector<8x128xf32>
    %c9 = arith.constant 9 : index
    %130 = memref.load %arg1[%c9] : memref<97xf32, #tpu.memory_space<smem>>
    %c41 = arith.constant 41 : index
    %131 = memref.load %arg1[%c41] : memref<97xf32, #tpu.memory_space<smem>>
    %c73 = arith.constant 73 : index
    %132 = memref.load %arg1[%c73] : memref<97xf32, #tpu.memory_space<smem>>
    %133 = vector.broadcast %130 : f32 to vector<8x128xf32>
    %134 = arith.mulf %133, %20 : vector<8x128xf32>
    %135 = vector.broadcast %131 : f32 to vector<8x128xf32>
    %136 = arith.addf %134, %135 : vector<8x128xf32>
    %cst_15 = arith.constant 0.000000e+00 : f32
    %137 = vector.broadcast %cst_15 : f32 to vector<8x128xf32>
    %138 = arith.maximumf %136, %137 : vector<8x128xf32>
    %139 = vector.broadcast %132 : f32 to vector<8x128xf32>
    %140 = arith.mulf %139, %138 : vector<8x128xf32>
    %141 = arith.addf %129, %140 : vector<8x128xf32>
    %c10 = arith.constant 10 : index
    %142 = memref.load %arg1[%c10] : memref<97xf32, #tpu.memory_space<smem>>
    %c42 = arith.constant 42 : index
    %143 = memref.load %arg1[%c42] : memref<97xf32, #tpu.memory_space<smem>>
    %c74 = arith.constant 74 : index
    %144 = memref.load %arg1[%c74] : memref<97xf32, #tpu.memory_space<smem>>
    %145 = vector.broadcast %142 : f32 to vector<8x128xf32>
    %146 = arith.mulf %145, %20 : vector<8x128xf32>
    %147 = vector.broadcast %143 : f32 to vector<8x128xf32>
    %148 = arith.addf %146, %147 : vector<8x128xf32>
    %cst_16 = arith.constant 0.000000e+00 : f32
    %149 = vector.broadcast %cst_16 : f32 to vector<8x128xf32>
    %150 = arith.maximumf %148, %149 : vector<8x128xf32>
    %151 = vector.broadcast %144 : f32 to vector<8x128xf32>
    %152 = arith.mulf %151, %150 : vector<8x128xf32>
    %153 = arith.addf %141, %152 : vector<8x128xf32>
    %c11 = arith.constant 11 : index
    %154 = memref.load %arg1[%c11] : memref<97xf32, #tpu.memory_space<smem>>
    %c43 = arith.constant 43 : index
    %155 = memref.load %arg1[%c43] : memref<97xf32, #tpu.memory_space<smem>>
    %c75 = arith.constant 75 : index
    %156 = memref.load %arg1[%c75] : memref<97xf32, #tpu.memory_space<smem>>
    %157 = vector.broadcast %154 : f32 to vector<8x128xf32>
    %158 = arith.mulf %157, %20 : vector<8x128xf32>
    %159 = vector.broadcast %155 : f32 to vector<8x128xf32>
    %160 = arith.addf %158, %159 : vector<8x128xf32>
    %cst_17 = arith.constant 0.000000e+00 : f32
    %161 = vector.broadcast %cst_17 : f32 to vector<8x128xf32>
    %162 = arith.maximumf %160, %161 : vector<8x128xf32>
    %163 = vector.broadcast %156 : f32 to vector<8x128xf32>
    %164 = arith.mulf %163, %162 : vector<8x128xf32>
    %165 = arith.addf %153, %164 : vector<8x128xf32>
    %c12 = arith.constant 12 : index
    %166 = memref.load %arg1[%c12] : memref<97xf32, #tpu.memory_space<smem>>
    %c44 = arith.constant 44 : index
    %167 = memref.load %arg1[%c44] : memref<97xf32, #tpu.memory_space<smem>>
    %c76 = arith.constant 76 : index
    %168 = memref.load %arg1[%c76] : memref<97xf32, #tpu.memory_space<smem>>
    %169 = vector.broadcast %166 : f32 to vector<8x128xf32>
    %170 = arith.mulf %169, %20 : vector<8x128xf32>
    %171 = vector.broadcast %167 : f32 to vector<8x128xf32>
    %172 = arith.addf %170, %171 : vector<8x128xf32>
    %cst_18 = arith.constant 0.000000e+00 : f32
    %173 = vector.broadcast %cst_18 : f32 to vector<8x128xf32>
    %174 = arith.maximumf %172, %173 : vector<8x128xf32>
    %175 = vector.broadcast %168 : f32 to vector<8x128xf32>
    %176 = arith.mulf %175, %174 : vector<8x128xf32>
    %177 = arith.addf %165, %176 : vector<8x128xf32>
    %c13 = arith.constant 13 : index
    %178 = memref.load %arg1[%c13] : memref<97xf32, #tpu.memory_space<smem>>
    %c45 = arith.constant 45 : index
    %179 = memref.load %arg1[%c45] : memref<97xf32, #tpu.memory_space<smem>>
    %c77 = arith.constant 77 : index
    %180 = memref.load %arg1[%c77] : memref<97xf32, #tpu.memory_space<smem>>
    %181 = vector.broadcast %178 : f32 to vector<8x128xf32>
    %182 = arith.mulf %181, %20 : vector<8x128xf32>
    %183 = vector.broadcast %179 : f32 to vector<8x128xf32>
    %184 = arith.addf %182, %183 : vector<8x128xf32>
    %cst_19 = arith.constant 0.000000e+00 : f32
    %185 = vector.broadcast %cst_19 : f32 to vector<8x128xf32>
    %186 = arith.maximumf %184, %185 : vector<8x128xf32>
    %187 = vector.broadcast %180 : f32 to vector<8x128xf32>
    %188 = arith.mulf %187, %186 : vector<8x128xf32>
    %189 = arith.addf %177, %188 : vector<8x128xf32>
    %c14 = arith.constant 14 : index
    %190 = memref.load %arg1[%c14] : memref<97xf32, #tpu.memory_space<smem>>
    %c46 = arith.constant 46 : index
    %191 = memref.load %arg1[%c46] : memref<97xf32, #tpu.memory_space<smem>>
    %c78 = arith.constant 78 : index
    %192 = memref.load %arg1[%c78] : memref<97xf32, #tpu.memory_space<smem>>
    %193 = vector.broadcast %190 : f32 to vector<8x128xf32>
    %194 = arith.mulf %193, %20 : vector<8x128xf32>
    %195 = vector.broadcast %191 : f32 to vector<8x128xf32>
    %196 = arith.addf %194, %195 : vector<8x128xf32>
    %cst_20 = arith.constant 0.000000e+00 : f32
    %197 = vector.broadcast %cst_20 : f32 to vector<8x128xf32>
    %198 = arith.maximumf %196, %197 : vector<8x128xf32>
    %199 = vector.broadcast %192 : f32 to vector<8x128xf32>
    %200 = arith.mulf %199, %198 : vector<8x128xf32>
    %201 = arith.addf %189, %200 : vector<8x128xf32>
    %c15 = arith.constant 15 : index
    %202 = memref.load %arg1[%c15] : memref<97xf32, #tpu.memory_space<smem>>
    %c47 = arith.constant 47 : index
    %203 = memref.load %arg1[%c47] : memref<97xf32, #tpu.memory_space<smem>>
    %c79 = arith.constant 79 : index
    %204 = memref.load %arg1[%c79] : memref<97xf32, #tpu.memory_space<smem>>
    %205 = vector.broadcast %202 : f32 to vector<8x128xf32>
    %206 = arith.mulf %205, %20 : vector<8x128xf32>
    %207 = vector.broadcast %203 : f32 to vector<8x128xf32>
    %208 = arith.addf %206, %207 : vector<8x128xf32>
    %cst_21 = arith.constant 0.000000e+00 : f32
    %209 = vector.broadcast %cst_21 : f32 to vector<8x128xf32>
    %210 = arith.maximumf %208, %209 : vector<8x128xf32>
    %211 = vector.broadcast %204 : f32 to vector<8x128xf32>
    %212 = arith.mulf %211, %210 : vector<8x128xf32>
    %213 = arith.addf %201, %212 : vector<8x128xf32>
    %c16 = arith.constant 16 : index
    %214 = memref.load %arg1[%c16] : memref<97xf32, #tpu.memory_space<smem>>
    %c48 = arith.constant 48 : index
    %215 = memref.load %arg1[%c48] : memref<97xf32, #tpu.memory_space<smem>>
    %c80 = arith.constant 80 : index
    %216 = memref.load %arg1[%c80] : memref<97xf32, #tpu.memory_space<smem>>
    %217 = vector.broadcast %214 : f32 to vector<8x128xf32>
    %218 = arith.mulf %217, %20 : vector<8x128xf32>
    %219 = vector.broadcast %215 : f32 to vector<8x128xf32>
    %220 = arith.addf %218, %219 : vector<8x128xf32>
    %cst_22 = arith.constant 0.000000e+00 : f32
    %221 = vector.broadcast %cst_22 : f32 to vector<8x128xf32>
    %222 = arith.maximumf %220, %221 : vector<8x128xf32>
    %223 = vector.broadcast %216 : f32 to vector<8x128xf32>
    %224 = arith.mulf %223, %222 : vector<8x128xf32>
    %225 = arith.addf %213, %224 : vector<8x128xf32>
    %c17 = arith.constant 17 : index
    %226 = memref.load %arg1[%c17] : memref<97xf32, #tpu.memory_space<smem>>
    %c49 = arith.constant 49 : index
    %227 = memref.load %arg1[%c49] : memref<97xf32, #tpu.memory_space<smem>>
    %c81 = arith.constant 81 : index
    %228 = memref.load %arg1[%c81] : memref<97xf32, #tpu.memory_space<smem>>
    %229 = vector.broadcast %226 : f32 to vector<8x128xf32>
    %230 = arith.mulf %229, %20 : vector<8x128xf32>
    %231 = vector.broadcast %227 : f32 to vector<8x128xf32>
    %232 = arith.addf %230, %231 : vector<8x128xf32>
    %cst_23 = arith.constant 0.000000e+00 : f32
    %233 = vector.broadcast %cst_23 : f32 to vector<8x128xf32>
    %234 = arith.maximumf %232, %233 : vector<8x128xf32>
    %235 = vector.broadcast %228 : f32 to vector<8x128xf32>
    %236 = arith.mulf %235, %234 : vector<8x128xf32>
    %237 = arith.addf %225, %236 : vector<8x128xf32>
    %c18 = arith.constant 18 : index
    %238 = memref.load %arg1[%c18] : memref<97xf32, #tpu.memory_space<smem>>
    %c50 = arith.constant 50 : index
    %239 = memref.load %arg1[%c50] : memref<97xf32, #tpu.memory_space<smem>>
    %c82 = arith.constant 82 : index
    %240 = memref.load %arg1[%c82] : memref<97xf32, #tpu.memory_space<smem>>
    %241 = vector.broadcast %238 : f32 to vector<8x128xf32>
    %242 = arith.mulf %241, %20 : vector<8x128xf32>
    %243 = vector.broadcast %239 : f32 to vector<8x128xf32>
    %244 = arith.addf %242, %243 : vector<8x128xf32>
    %cst_24 = arith.constant 0.000000e+00 : f32
    %245 = vector.broadcast %cst_24 : f32 to vector<8x128xf32>
    %246 = arith.maximumf %244, %245 : vector<8x128xf32>
    %247 = vector.broadcast %240 : f32 to vector<8x128xf32>
    %248 = arith.mulf %247, %246 : vector<8x128xf32>
    %249 = arith.addf %237, %248 : vector<8x128xf32>
    %c19 = arith.constant 19 : index
    %250 = memref.load %arg1[%c19] : memref<97xf32, #tpu.memory_space<smem>>
    %c51 = arith.constant 51 : index
    %251 = memref.load %arg1[%c51] : memref<97xf32, #tpu.memory_space<smem>>
    %c83 = arith.constant 83 : index
    %252 = memref.load %arg1[%c83] : memref<97xf32, #tpu.memory_space<smem>>
    %253 = vector.broadcast %250 : f32 to vector<8x128xf32>
    %254 = arith.mulf %253, %20 : vector<8x128xf32>
    %255 = vector.broadcast %251 : f32 to vector<8x128xf32>
    %256 = arith.addf %254, %255 : vector<8x128xf32>
    %cst_25 = arith.constant 0.000000e+00 : f32
    %257 = vector.broadcast %cst_25 : f32 to vector<8x128xf32>
    %258 = arith.maximumf %256, %257 : vector<8x128xf32>
    %259 = vector.broadcast %252 : f32 to vector<8x128xf32>
    %260 = arith.mulf %259, %258 : vector<8x128xf32>
    %261 = arith.addf %249, %260 : vector<8x128xf32>
    %c20 = arith.constant 20 : index
    %262 = memref.load %arg1[%c20] : memref<97xf32, #tpu.memory_space<smem>>
    %c52 = arith.constant 52 : index
    %263 = memref.load %arg1[%c52] : memref<97xf32, #tpu.memory_space<smem>>
    %c84 = arith.constant 84 : index
    %264 = memref.load %arg1[%c84] : memref<97xf32, #tpu.memory_space<smem>>
    %265 = vector.broadcast %262 : f32 to vector<8x128xf32>
    %266 = arith.mulf %265, %20 : vector<8x128xf32>
    %267 = vector.broadcast %263 : f32 to vector<8x128xf32>
    %268 = arith.addf %266, %267 : vector<8x128xf32>
    %cst_26 = arith.constant 0.000000e+00 : f32
    %269 = vector.broadcast %cst_26 : f32 to vector<8x128xf32>
    %270 = arith.maximumf %268, %269 : vector<8x128xf32>
    %271 = vector.broadcast %264 : f32 to vector<8x128xf32>
    %272 = arith.mulf %271, %270 : vector<8x128xf32>
    %273 = arith.addf %261, %272 : vector<8x128xf32>
    %c21 = arith.constant 21 : index
    %274 = memref.load %arg1[%c21] : memref<97xf32, #tpu.memory_space<smem>>
    %c53 = arith.constant 53 : index
    %275 = memref.load %arg1[%c53] : memref<97xf32, #tpu.memory_space<smem>>
    %c85 = arith.constant 85 : index
    %276 = memref.load %arg1[%c85] : memref<97xf32, #tpu.memory_space<smem>>
    %277 = vector.broadcast %274 : f32 to vector<8x128xf32>
    %278 = arith.mulf %277, %20 : vector<8x128xf32>
    %279 = vector.broadcast %275 : f32 to vector<8x128xf32>
    %280 = arith.addf %278, %279 : vector<8x128xf32>
    %cst_27 = arith.constant 0.000000e+00 : f32
    %281 = vector.broadcast %cst_27 : f32 to vector<8x128xf32>
    %282 = arith.maximumf %280, %281 : vector<8x128xf32>
    %283 = vector.broadcast %276 : f32 to vector<8x128xf32>
    %284 = arith.mulf %283, %282 : vector<8x128xf32>
    %285 = arith.addf %273, %284 : vector<8x128xf32>
    %c22 = arith.constant 22 : index
    %286 = memref.load %arg1[%c22] : memref<97xf32, #tpu.memory_space<smem>>
    %c54 = arith.constant 54 : index
    %287 = memref.load %arg1[%c54] : memref<97xf32, #tpu.memory_space<smem>>
    %c86 = arith.constant 86 : index
    %288 = memref.load %arg1[%c86] : memref<97xf32, #tpu.memory_space<smem>>
    %289 = vector.broadcast %286 : f32 to vector<8x128xf32>
    %290 = arith.mulf %289, %20 : vector<8x128xf32>
    %291 = vector.broadcast %287 : f32 to vector<8x128xf32>
    %292 = arith.addf %290, %291 : vector<8x128xf32>
    %cst_28 = arith.constant 0.000000e+00 : f32
    %293 = vector.broadcast %cst_28 : f32 to vector<8x128xf32>
    %294 = arith.maximumf %292, %293 : vector<8x128xf32>
    %295 = vector.broadcast %288 : f32 to vector<8x128xf32>
    %296 = arith.mulf %295, %294 : vector<8x128xf32>
    %297 = arith.addf %285, %296 : vector<8x128xf32>
    %c23 = arith.constant 23 : index
    %298 = memref.load %arg1[%c23] : memref<97xf32, #tpu.memory_space<smem>>
    %c55 = arith.constant 55 : index
    %299 = memref.load %arg1[%c55] : memref<97xf32, #tpu.memory_space<smem>>
    %c87 = arith.constant 87 : index
    %300 = memref.load %arg1[%c87] : memref<97xf32, #tpu.memory_space<smem>>
    %301 = vector.broadcast %298 : f32 to vector<8x128xf32>
    %302 = arith.mulf %301, %20 : vector<8x128xf32>
    %303 = vector.broadcast %299 : f32 to vector<8x128xf32>
    %304 = arith.addf %302, %303 : vector<8x128xf32>
    %cst_29 = arith.constant 0.000000e+00 : f32
    %305 = vector.broadcast %cst_29 : f32 to vector<8x128xf32>
    %306 = arith.maximumf %304, %305 : vector<8x128xf32>
    %307 = vector.broadcast %300 : f32 to vector<8x128xf32>
    %308 = arith.mulf %307, %306 : vector<8x128xf32>
    %309 = arith.addf %297, %308 : vector<8x128xf32>
    %c24 = arith.constant 24 : index
    %310 = memref.load %arg1[%c24] : memref<97xf32, #tpu.memory_space<smem>>
    %c56 = arith.constant 56 : index
    %311 = memref.load %arg1[%c56] : memref<97xf32, #tpu.memory_space<smem>>
    %c88 = arith.constant 88 : index
    %312 = memref.load %arg1[%c88] : memref<97xf32, #tpu.memory_space<smem>>
    %313 = vector.broadcast %310 : f32 to vector<8x128xf32>
    %314 = arith.mulf %313, %20 : vector<8x128xf32>
    %315 = vector.broadcast %311 : f32 to vector<8x128xf32>
    %316 = arith.addf %314, %315 : vector<8x128xf32>
    %cst_30 = arith.constant 0.000000e+00 : f32
    %317 = vector.broadcast %cst_30 : f32 to vector<8x128xf32>
    %318 = arith.maximumf %316, %317 : vector<8x128xf32>
    %319 = vector.broadcast %312 : f32 to vector<8x128xf32>
    %320 = arith.mulf %319, %318 : vector<8x128xf32>
    %321 = arith.addf %309, %320 : vector<8x128xf32>
    %c25 = arith.constant 25 : index
    %322 = memref.load %arg1[%c25] : memref<97xf32, #tpu.memory_space<smem>>
    %c57 = arith.constant 57 : index
    %323 = memref.load %arg1[%c57] : memref<97xf32, #tpu.memory_space<smem>>
    %c89 = arith.constant 89 : index
    %324 = memref.load %arg1[%c89] : memref<97xf32, #tpu.memory_space<smem>>
    %325 = vector.broadcast %322 : f32 to vector<8x128xf32>
    %326 = arith.mulf %325, %20 : vector<8x128xf32>
    %327 = vector.broadcast %323 : f32 to vector<8x128xf32>
    %328 = arith.addf %326, %327 : vector<8x128xf32>
    %cst_31 = arith.constant 0.000000e+00 : f32
    %329 = vector.broadcast %cst_31 : f32 to vector<8x128xf32>
    %330 = arith.maximumf %328, %329 : vector<8x128xf32>
    %331 = vector.broadcast %324 : f32 to vector<8x128xf32>
    %332 = arith.mulf %331, %330 : vector<8x128xf32>
    %333 = arith.addf %321, %332 : vector<8x128xf32>
    %c26 = arith.constant 26 : index
    %334 = memref.load %arg1[%c26] : memref<97xf32, #tpu.memory_space<smem>>
    %c58 = arith.constant 58 : index
    %335 = memref.load %arg1[%c58] : memref<97xf32, #tpu.memory_space<smem>>
    %c90 = arith.constant 90 : index
    %336 = memref.load %arg1[%c90] : memref<97xf32, #tpu.memory_space<smem>>
    %337 = vector.broadcast %334 : f32 to vector<8x128xf32>
    %338 = arith.mulf %337, %20 : vector<8x128xf32>
    %339 = vector.broadcast %335 : f32 to vector<8x128xf32>
    %340 = arith.addf %338, %339 : vector<8x128xf32>
    %cst_32 = arith.constant 0.000000e+00 : f32
    %341 = vector.broadcast %cst_32 : f32 to vector<8x128xf32>
    %342 = arith.maximumf %340, %341 : vector<8x128xf32>
    %343 = vector.broadcast %336 : f32 to vector<8x128xf32>
    %344 = arith.mulf %343, %342 : vector<8x128xf32>
    %345 = arith.addf %333, %344 : vector<8x128xf32>
    %c27 = arith.constant 27 : index
    %346 = memref.load %arg1[%c27] : memref<97xf32, #tpu.memory_space<smem>>
    %c59 = arith.constant 59 : index
    %347 = memref.load %arg1[%c59] : memref<97xf32, #tpu.memory_space<smem>>
    %c91 = arith.constant 91 : index
    %348 = memref.load %arg1[%c91] : memref<97xf32, #tpu.memory_space<smem>>
    %349 = vector.broadcast %346 : f32 to vector<8x128xf32>
    %350 = arith.mulf %349, %20 : vector<8x128xf32>
    %351 = vector.broadcast %347 : f32 to vector<8x128xf32>
    %352 = arith.addf %350, %351 : vector<8x128xf32>
    %cst_33 = arith.constant 0.000000e+00 : f32
    %353 = vector.broadcast %cst_33 : f32 to vector<8x128xf32>
    %354 = arith.maximumf %352, %353 : vector<8x128xf32>
    %355 = vector.broadcast %348 : f32 to vector<8x128xf32>
    %356 = arith.mulf %355, %354 : vector<8x128xf32>
    %357 = arith.addf %345, %356 : vector<8x128xf32>
    %c28 = arith.constant 28 : index
    %358 = memref.load %arg1[%c28] : memref<97xf32, #tpu.memory_space<smem>>
    %c60 = arith.constant 60 : index
    %359 = memref.load %arg1[%c60] : memref<97xf32, #tpu.memory_space<smem>>
    %c92 = arith.constant 92 : index
    %360 = memref.load %arg1[%c92] : memref<97xf32, #tpu.memory_space<smem>>
    %361 = vector.broadcast %358 : f32 to vector<8x128xf32>
    %362 = arith.mulf %361, %20 : vector<8x128xf32>
    %363 = vector.broadcast %359 : f32 to vector<8x128xf32>
    %364 = arith.addf %362, %363 : vector<8x128xf32>
    %cst_34 = arith.constant 0.000000e+00 : f32
    %365 = vector.broadcast %cst_34 : f32 to vector<8x128xf32>
    %366 = arith.maximumf %364, %365 : vector<8x128xf32>
    %367 = vector.broadcast %360 : f32 to vector<8x128xf32>
    %368 = arith.mulf %367, %366 : vector<8x128xf32>
    %369 = arith.addf %357, %368 : vector<8x128xf32>
    %c29 = arith.constant 29 : index
    %370 = memref.load %arg1[%c29] : memref<97xf32, #tpu.memory_space<smem>>
    %c61 = arith.constant 61 : index
    %371 = memref.load %arg1[%c61] : memref<97xf32, #tpu.memory_space<smem>>
    %c93 = arith.constant 93 : index
    %372 = memref.load %arg1[%c93] : memref<97xf32, #tpu.memory_space<smem>>
    %373 = vector.broadcast %370 : f32 to vector<8x128xf32>
    %374 = arith.mulf %373, %20 : vector<8x128xf32>
    %375 = vector.broadcast %371 : f32 to vector<8x128xf32>
    %376 = arith.addf %374, %375 : vector<8x128xf32>
    %cst_35 = arith.constant 0.000000e+00 : f32
    %377 = vector.broadcast %cst_35 : f32 to vector<8x128xf32>
    %378 = arith.maximumf %376, %377 : vector<8x128xf32>
    %379 = vector.broadcast %372 : f32 to vector<8x128xf32>
    %380 = arith.mulf %379, %378 : vector<8x128xf32>
    %381 = arith.addf %369, %380 : vector<8x128xf32>
    %c30 = arith.constant 30 : index
    %382 = memref.load %arg1[%c30] : memref<97xf32, #tpu.memory_space<smem>>
    %c62 = arith.constant 62 : index
    %383 = memref.load %arg1[%c62] : memref<97xf32, #tpu.memory_space<smem>>
    %c94 = arith.constant 94 : index
    %384 = memref.load %arg1[%c94] : memref<97xf32, #tpu.memory_space<smem>>
    %385 = vector.broadcast %382 : f32 to vector<8x128xf32>
    %386 = arith.mulf %385, %20 : vector<8x128xf32>
    %387 = vector.broadcast %383 : f32 to vector<8x128xf32>
    %388 = arith.addf %386, %387 : vector<8x128xf32>
    %cst_36 = arith.constant 0.000000e+00 : f32
    %389 = vector.broadcast %cst_36 : f32 to vector<8x128xf32>
    %390 = arith.maximumf %388, %389 : vector<8x128xf32>
    %391 = vector.broadcast %384 : f32 to vector<8x128xf32>
    %392 = arith.mulf %391, %390 : vector<8x128xf32>
    %393 = arith.addf %381, %392 : vector<8x128xf32>
    %c31 = arith.constant 31 : index
    %394 = memref.load %arg1[%c31] : memref<97xf32, #tpu.memory_space<smem>>
    %c63 = arith.constant 63 : index
    %395 = memref.load %arg1[%c63] : memref<97xf32, #tpu.memory_space<smem>>
    %c95 = arith.constant 95 : index
    %396 = memref.load %arg1[%c95] : memref<97xf32, #tpu.memory_space<smem>>
    %397 = vector.broadcast %394 : f32 to vector<8x128xf32>
    %398 = arith.mulf %397, %20 : vector<8x128xf32>
    %399 = vector.broadcast %395 : f32 to vector<8x128xf32>
    %400 = arith.addf %398, %399 : vector<8x128xf32>
    %cst_37 = arith.constant 0.000000e+00 : f32
    %401 = vector.broadcast %cst_37 : f32 to vector<8x128xf32>
    %402 = arith.maximumf %400, %401 : vector<8x128xf32>
    %403 = vector.broadcast %396 : f32 to vector<8x128xf32>
    %404 = arith.mulf %403, %402 : vector<8x128xf32>
    %405 = arith.addf %393, %404 : vector<8x128xf32>
    %c96 = arith.constant 96 : index
    %406 = memref.load %arg1[%c96] : memref<97xf32, #tpu.memory_space<smem>>
    %407 = vector.broadcast %406 : f32 to vector<8x128xf32>
    %408 = arith.addf %405, %407 : vector<8x128xf32>
    %cst_38 = arith.constant 9.99999974E-6 : f32
    %409 = vector.broadcast %cst_38 : f32 to vector<8x128xf32>
    %410 = arith.addf %20, %409 : vector<8x128xf32>
    %411 = tpu.reciprocal %410 {approx = true} : vector<8x128xf32> -> vector<8x128xf32>
    %412 = arith.mulf %410, %411 : vector<8x128xf32>
    %cst_39 = arith.constant 2.000000e+00 : f32
    %413 = vector.broadcast %cst_39 : f32 to vector<8x128xf32>
    %414 = arith.subf %413, %412 : vector<8x128xf32>
    %415 = arith.mulf %411, %414 : vector<8x128xf32>
    %416 = arith.mulf %408, %415 : vector<8x128xf32>
    %417 = arith.mulf %416, %2 : vector<8x128xf32>
    %418 = vector.extract_strided_slice %0 {offsets = [0, 0, 0], sizes = [1, 8, 128], strides = [1, 1, 1]} : vector<3x8x128xf32> to vector<1x8x128xf32>
    %419 = vector.shape_cast %418 : vector<1x8x128xf32> to vector<8x128xf32>
    %420 = arith.mulf %419, %417 : vector<8x128xf32>
    %cst_40 = arith.constant dense<0.000000e+00> : vector<8xf32>
    %421 = vector.multi_reduction <add>, %420, %cst_40 [1] : vector<8x128xf32> to vector<8xf32>
    %422 = vector.shape_cast %421 : vector<8xf32> to vector<8x1xf32>
    %cst_41 = arith.constant 1.250000e-01 : f32
    %423 = vector.broadcast %cst_41 : f32 to vector<8x1xf32>
    %424 = arith.mulf %422, %423 : vector<8x1xf32>
    %425 = vector.broadcast %424 : vector<8x1xf32> to vector<8x128xf32>
    %426 = arith.subf %420, %425 : vector<8x128xf32>
    %c0_42 = arith.constant 0 : index
    %c0_43 = arith.constant 0 : index
    %c0_44 = arith.constant 0 : index
    %427 = vector.load %arg4[%c0_42, %c0_43, %c0_44] : memref<3x8x128xf32, #tpu.memory_space<vmem>>, vector<1x8x128xf32>
    %428 = vector.shape_cast %427 : vector<1x8x128xf32> to vector<8x128xf32>
    %429 = vector.shape_cast %426 : vector<8x128xf32> to vector<1x8x128xf32>
    tpu.vector_store %arg4[%c0_42, %c0_43, %c0_44], %429 {strides = array<i32>} : memref<3x8x128xf32, #tpu.memory_space<vmem>>, vector<1x8x128xf32>,
    %430 = vector.extract_strided_slice %0 {offsets = [1, 0, 0], sizes = [1, 8, 128], strides = [1, 1, 1]} : vector<3x8x128xf32> to vector<1x8x128xf32>
    %431 = vector.shape_cast %430 : vector<1x8x128xf32> to vector<8x128xf32>
    %432 = arith.mulf %431, %417 : vector<8x128xf32>
    %cst_45 = arith.constant dense<0.000000e+00> : vector<8xf32>
    %433 = vector.multi_reduction <add>, %432, %cst_45 [1] : vector<8x128xf32> to vector<8xf32>
    %434 = vector.shape_cast %433 : vector<8xf32> to vector<8x1xf32>
    %cst_46 = arith.constant 1.250000e-01 : f32
    %435 = vector.broadcast %cst_46 : f32 to vector<8x1xf32>
    %436 = arith.mulf %434, %435 : vector<8x1xf32>
    %437 = vector.broadcast %436 : vector<8x1xf32> to vector<8x128xf32>
    %438 = arith.subf %432, %437 : vector<8x128xf32>
    %c1_47 = arith.constant 1 : index
    %c0_48 = arith.constant 0 : index
    %c0_49 = arith.constant 0 : index
    %439 = vector.load %arg4[%c1_47, %c0_48, %c0_49] : memref<3x8x128xf32, #tpu.memory_space<vmem>>, vector<1x8x128xf32>
    %440 = vector.shape_cast %439 : vector<1x8x128xf32> to vector<8x128xf32>
    %441 = vector.shape_cast %438 : vector<8x128xf32> to vector<1x8x128xf32>
    tpu.vector_store %arg4[%c1_47, %c0_48, %c0_49], %441 {strides = array<i32>} : memref<3x8x128xf32, #tpu.memory_space<vmem>>, vector<1x8x128xf32>,
    %442 = vector.extract_strided_slice %0 {offsets = [2, 0, 0], sizes = [1, 8, 128], strides = [1, 1, 1]} : vector<3x8x128xf32> to vector<1x8x128xf32>
    %443 = vector.shape_cast %442 : vector<1x8x128xf32> to vector<8x128xf32>
    %444 = arith.mulf %443, %417 : vector<8x128xf32>
    %cst_50 = arith.constant dense<0.000000e+00> : vector<8xf32>
    %445 = vector.multi_reduction <add>, %444, %cst_50 [1] : vector<8x128xf32> to vector<8xf32>
    %446 = vector.shape_cast %445 : vector<8xf32> to vector<8x1xf32>
    %cst_51 = arith.constant 1.250000e-01 : f32
    %447 = vector.broadcast %cst_51 : f32 to vector<8x1xf32>
    %448 = arith.mulf %446, %447 : vector<8x1xf32>
    %449 = vector.broadcast %448 : vector<8x1xf32> to vector<8x128xf32>
    %450 = arith.subf %444, %449 : vector<8x128xf32>
    %c2_52 = arith.constant 2 : index
    %c0_53 = arith.constant 0 : index
    %c0_54 = arith.constant 0 : index
    %451 = vector.load %arg4[%c2_52, %c0_53, %c0_54] : memref<3x8x128xf32, #tpu.memory_space<vmem>>, vector<1x8x128xf32>
    %452 = vector.shape_cast %451 : vector<1x8x128xf32> to vector<8x128xf32>
    %453 = vector.shape_cast %450 : vector<8x128xf32> to vector<1x8x128xf32>
    tpu.vector_store %arg4[%c2_52, %c0_53, %c0_54], %453 {strides = array<i32>} : memref<3x8x128xf32, #tpu.memory_space<vmem>>, vector<1x8x128xf32>,
    return
  }
  func.func @transform_0(%arg0: i32) -> i32 {
    %c0_i32 = arith.constant 0 : i32
    %c0_i32_0 = arith.constant 0 : i32
    return %c0_i32 : i32
  }
  func.func @transform_1(%arg0: i32) -> (i32, i32, i32) {
    %c0_i32 = arith.constant 0 : i32
    %c0_i32_0 = arith.constant 0 : i32
    %c0_i32_1 = arith.constant 0 : i32
    return %c0_i32, %arg0, %c0_i32_0 : i32, i32, i32
  }
  func.func @transform_2(%arg0: i32) -> (i32, i32, i32) {
    %c0_i32 = arith.constant 0 : i32
    %c0_i32_0 = arith.constant 0 : i32
    %c0_i32_1 = arith.constant 0 : i32
    return %c0_i32, %arg0, %c0_i32_0 : i32, i32, i32
  }
  func.func @transform_3(%arg0: i32) -> (i32, i32, i32) {
    %c0_i32 = arith.constant 0 : i32
    %c0_i32_0 = arith.constant 0 : i32
    %c0_i32_1 = arith.constant 0 : i32
    return %c0_i32, %arg0, %c0_i32_0 : i32, i32, i32
  }
}

</mosaic_0001>

<llo_original>
// kernel: tpu_custom_call.1
$region0: #{tpu_custom_call.1}
  #allocation0 [shape = 'u32[]', space=smem, size = 0x4, offset = 0x4, fixed_abs, tag = 'smem constant byte address 0x4 - core index']
  #allocation1 [shape = 'u32[144,128]{1,0:T(1,128)}', space=vmem, size = 0x12000, scoped, tag = 'internal scratch']
  %s0 = inlined_call_operand.hbm [shape: f32[97], index: 0, kind: input, shape index: {}]
  %s1 = inlined_call_operand.hbm [shape: f32[3,8,128], index: 1, kind: input, shape index: {}]
  %s2 = inlined_call_operand.hbm [shape: f32[1,8,128], index: 2, kind: input, shape index: {}]
  %s3 = inlined_call_operand.hbm [shape: f32[3,8,128], index: 3, kind: output, shape index: {}]
  %s4 = sld [smem:[#allocation0]]
  $region34: #{tpu_custom_call.1} parent=0
    _
  %s6 = ssub.s32 1, %s4
  %s7 = scalar_select 0, %s6, %s4
  $region1: #{tpu_custom_call.1} parent=0
    #allocation2 [shape = 'u8[512]{0}', space=smem, size = 0x200, scoped, tag = 'input window, operand 0, single buffered']
    #allocation3 [shape = 's32[1]{0}', space=sflag, size = 0x4, scoped, tag = 'scoped memory for tpu_custom_call.1']
    #allocation4 [shape = 's32[1]{0}', space=sflag, size = 0x4, scoped, tag = 'scoped memory for tpu_custom_call.1']
    #allocation5 [shape = 's32[1]{0}', space=sflag, size = 0x4, scoped, tag = 'scoped memory for tpu_custom_call.1']
    #allocation6 [shape = 'u8[12288]{0}', space=vmem, size = 0x3000, scoped, tag = 'input window, operand 1, single buffered']
    #allocation7 [shape = 'u8[4096]{0}', space=vmem, size = 0x1000, scoped, tag = 'input window, operand 2, single buffered']
    #allocation8 [shape = 's32[1]{0}', space=sflag, size = 0x4, scoped, tag = 'scoped memory for tpu_custom_call.1']
    #allocation9 [shape = 'u8[12288]{0}', space=vmem, size = 0x3000, scoped, tag = 'output window, operand 0, single buffered']
    %8 = vsyncpa [#allocation5], 0
    %9 = vsyncpa [#allocation3], 0
    %10 = vsyncpa [#allocation8], 0
    %11 = vsyncpa [#allocation4], 0
    // Predicated region
    $region2: #{tpu_custom_call.1} parent=1 // pred_check
      _
    $region3: #{tpu_custom_call.1} parent=1 // pred_check_branch
      %13 = sbr.rel (0) target = $region5
    $region4: #{tpu_custom_call.1} parent=1 // pred_region
      %s15 = ssub.s32 16, 16
      %16 = vsyncadd [#allocation5], %s15
      %19 = dma.hbm_to_smem %s0, 16, [#allocation2], [#allocation5]
    $region5: #{tpu_custom_call.1} parent=1 // pred_fallthru
      _
    // Predicated region
    $region6: #{tpu_custom_call.1} parent=1 // pred_check
      _
    $region7: #{tpu_custom_call.1} parent=1 // pred_check_branch
      %21 = sbr.rel (0) target = $region9
    $region8: #{tpu_custom_call.1} parent=1 // pred_region
      %s23 = ssub.s32 384, 384
      %24 = vsyncadd [#allocation3], %s23
      %s25 = sshll.u32 [#allocation6], 4
      %s26 = int_to_ptr.vmem [resolvable:$true] %s25
      %31 = dma.hbm_to_vmem [thread:$0]  %s1, 384, %s26, [#allocation3], 128, 128, 8
    $region9: #{tpu_custom_call.1} parent=1 // pred_fallthru
      _
    // Predicated region
    $region10: #{tpu_custom_call.1} parent=1 // pred_check
      _
    $region11: #{tpu_custom_call.1} parent=1 // pred_check_branch
      %33 = sbr.rel (0) target = $region13
    $region12: #{tpu_custom_call.1} parent=1 // pred_region
      %s35 = ssub.s32 128, 128
      %36 = vsyncadd [#allocation8], %s35
      %s38 = sshll.u32 [#allocation7], 4
      %s39 = int_to_ptr.vmem [resolvable:$true] %s38
      %41 = dma.hbm_to_vmem [thread:$0]  %s2, 128, %s39, [#allocation8]
    $region13: #{tpu_custom_call.1} parent=1 // pred_fallthru
      _
    // Predicated region
    $region14: #{tpu_custom_call.1} parent=1 // pred_check
      _
    $region15: #{tpu_custom_call.1} parent=1 // pred_check_branch
      %43 = sbr.rel (0) target = $region17
    $region16: #{tpu_custom_call.1} parent=1 // pred_region
      %44 = dma.done [#allocation5], 16
    $region17: #{tpu_custom_call.1} parent=1 // pred_fallthru
      _
    // Predicated region
    $region18: #{tpu_custom_call.1} parent=1 // pred_check
      _
    $region19: #{tpu_custom_call.1} parent=1 // pred_check_branch
      %46 = sbr.rel (0) target = $region21
    $region20: #{tpu_custom_call.1} parent=1 // pred_region
      %47 = dma.done [#allocation3], 384
    $region21: #{tpu_custom_call.1} parent=1 // pred_fallthru
      _
    // Predicated region
    $region22: #{tpu_custom_call.1} parent=1 // pred_check
      _
    $region23: #{tpu_custom_call.1} parent=1 // pred_check_branch
      %49 = sbr.rel (0) target = $region25
    $region24: #{tpu_custom_call.1} parent=1 // pred_region
      %50 = dma.done [#allocation8], 128
    $region25: #{tpu_custom_call.1} parent=1 // pred_fallthru
      _
    %51 = sfence
    %v52 = vld [vmem:[#allocation6] sm:$0xff]
    %v53 = vld [vmem:[#allocation6 + $0x8] sm:$0xff]
    %v54 = vld [vmem:[#allocation6 + $0x10] sm:$0xff]
    %v55 = vld [vmem:[#allocation7] sm:$0xff]
    %v56 = vmul.f32 %v52, %v52
    %v57 = vmul.f32 %v53, %v53
    %v58 = vadd.f32 %v56, %v57
    %v59 = vmul.f32 %v54, %v54
    %v60 = vadd.f32 %v58, %v59
    %v61 = vrsqrt.pop %v60
    %v62 = vmul.f32 %v60, %v61
    %vm63 = vcmp.eq.f32.partialorder %v60, inf
    %v64 = vsel %vm63, %v60, %v62
    %vm65 = vcmp.eq.f32.partialorder %v60, 0.0
    %v66 = vand.u32 %v60, 2147483648
    %v67 = vsel %vm65, %v66, %v64
    %s68 = sld [smem:[#allocation2]]
    %s69 = sld [smem:[#allocation2 + $0x20]]
    %s70 = sld [smem:[#allocation2 + $0x40]]
    %v71 = vstv %s68
    %v72 = vmul.f32 %v71, %v67
    %v73 = vstv %s69
    %v74 = vadd.f32 %v72, %v73
    %v75 = vmax.f32 %v74, 0.0
    %v76 = vstv %s70
    %v77 = vmul.f32 %v76, %v75
    %v78 = vadd.f32 %v77, 0.0
    %s79 = sld [smem:[#allocation2 + $0x1]]
    %s80 = sld [smem:[#allocation2 + $0x21]]
    %s81 = sld [smem:[#allocation2 + $0x41]]
    %v82 = vstv %s79
    %v83 = vmul.f32 %v82, %v67
    %v84 = vstv %s80
    %v85 = vadd.f32 %v83, %v84
    %v86 = vmax.f32 %v85, 0.0
    %v87 = vstv %s81
    %v88 = vmul.f32 %v87, %v86
    %v89 = vadd.f32 %v78, %v88
    %s90 = sld [smem:[#allocation2 + $0x2]]
    %s91 = sld [smem:[#allocation2 + $0x22]]
    %s92 = sld [smem:[#allocation2 + $0x42]]
    %v93 = vstv %s90
    %v94 = vmul.f32 %v93, %v67
    %v95 = vstv %s91
    %v96 = vadd.f32 %v94, %v95
    %v97 = vmax.f32 %v96, 0.0
    %v98 = vstv %s92
    %v99 = vmul.f32 %v98, %v97
    %v100 = vadd.f32 %v89, %v99
    %s101 = sld [smem:[#allocation2 + $0x3]]
    %s102 = sld [smem:[#allocation2 + $0x23]]
    %s103 = sld [smem:[#allocation2 + $0x43]]
    %v104 = vstv %s101
    %v105 = vmul.f32 %v104, %v67
    %v106 = vstv %s102
    %v107 = vadd.f32 %v105, %v106
    %v108 = vmax.f32 %v107, 0.0
    %v109 = vstv %s103
    %v110 = vmul.f32 %v109, %v108
    %v111 = vadd.f32 %v100, %v110
    %s112 = sld [smem:[#allocation2 + $0x4]]
    %s113 = sld [smem:[#allocation2 + $0x24]]
    %s114 = sld [smem:[#allocation2 + $0x44]]
    %v115 = vstv %s112
    %v116 = vmul.f32 %v115, %v67
    %v117 = vstv %s113
    %v118 = vadd.f32 %v116, %v117
    %v119 = vmax.f32 %v118, 0.0
    %v120 = vstv %s114
    %v121 = vmul.f32 %v120, %v119
    %v122 = vadd.f32 %v111, %v121
    %s123 = sld [smem:[#allocation2 + $0x5]]
    %s124 = sld [smem:[#allocation2 + $0x25]]
    %s125 = sld [smem:[#allocation2 + $0x45]]
    %v126 = vstv %s123
    %v127 = vmul.f32 %v126, %v67
    %v128 = vstv %s124
    %v129 = vadd.f32 %v127, %v128
    %v130 = vmax.f32 %v129, 0.0
    %v131 = vstv %s125
    %v132 = vmul.f32 %v131, %v130
    %v133 = vadd.f32 %v122, %v132
    %s134 = sld [smem:[#allocation2 + $0x6]]
    %s135 = sld [smem:[#allocation2 + $0x26]]
    %s136 = sld [smem:[#allocation2 + $0x46]]
    %v137 = vstv %s134
    %v138 = vmul.f32 %v137, %v67
    %v139 = vstv %s135
    %v140 = vadd.f32 %v138, %v139
    %v141 = vmax.f32 %v140, 0.0
    %v142 = vstv %s136
    %v143 = vmul.f32 %v142, %v141
    %v144 = vadd.f32 %v133, %v143
    %s145 = sld [smem:[#allocation2 + $0x7]]
    %s146 = sld [smem:[#allocation2 + $0x27]]
    %s147 = sld [smem:[#allocation2 + $0x47]]
    %v148 = vstv %s145
    %v149 = vmul.f32 %v148, %v67
    %v150 = vstv %s146
    %v151 = vadd.f32 %v149, %v150
    %v152 = vmax.f32 %v151, 0.0
    %v153 = vstv %s147
    %v154 = vmul.f32 %v153, %v152
    %v155 = vadd.f32 %v144, %v154
    %s156 = sld [smem:[#allocation2 + $0x8]]
    %s157 = sld [smem:[#allocation2 + $0x28]]
    %s158 = sld [smem:[#allocation2 + $0x48]]
    %v159 = vstv %s156
    %v160 = vmul.f32 %v159, %v67
    %v161 = vstv %s157
    %v162 = vadd.f32 %v160, %v161
    %v163 = vmax.f32 %v162, 0.0
    %v164 = vstv %s158
    %v165 = vmul.f32 %v164, %v163
    %v166 = vadd.f32 %v155, %v165
    %s167 = sld [smem:[#allocation2 + $0x9]]
    %s168 = sld [smem:[#allocation2 + $0x29]]
    %s169 = sld [smem:[#allocation2 + $0x49]]
    %v170 = vstv %s167
    %v171 = vmul.f32 %v170, %v67
    %v172 = vstv %s168
    %v173 = vadd.f32 %v171, %v172
    %v174 = vmax.f32 %v173, 0.0
    %v175 = vstv %s169
    %v176 = vmul.f32 %v175, %v174
    %v177 = vadd.f32 %v166, %v176
    %s178 = sld [smem:[#allocation2 + $0xa]]
    %s179 = sld [smem:[#allocation2 + $0x2a]]
    %s180 = sld [smem:[#allocation2 + $0x4a]]
    %v181 = vstv %s178
    %v182 = vmul.f32 %v181, %v67
    %v183 = vstv %s179
    %v184 = vadd.f32 %v182, %v183
    %v185 = vmax.f32 %v184, 0.0
    %v186 = vstv %s180
    %v187 = vmul.f32 %v186, %v185
    %v188 = vadd.f32 %v177, %v187
    %s189 = sld [smem:[#allocation2 + $0xb]]
    %s190 = sld [smem:[#allocation2 + $0x2b]]
    %s191 = sld [smem:[#allocation2 + $0x4b]]
    %v192 = vstv %s189
    %v193 = vmul.f32 %v192, %v67
    %v194 = vstv %s190
    %v195 = vadd.f32 %v193, %v194
    %v196 = vmax.f32 %v195, 0.0
    %v197 = vstv %s191
    %v198 = vmul.f32 %v197, %v196
    %v199 = vadd.f32 %v188, %v198
    %s200 = sld [smem:[#allocation2 + $0xc]]
    %s201 = sld [smem:[#allocation2 + $0x2c]]
    %s202 = sld [smem:[#allocation2 + $0x4c]]
    %v203 = vstv %s200
    %v204 = vmul.f32 %v203, %v67
    %v205 = vstv %s201
    %v206 = vadd.f32 %v204, %v205
    %v207 = vmax.f32 %v206, 0.0
    %v208 = vstv %s202
    %v209 = vmul.f32 %v208, %v207
    %v210 = vadd.f32 %v199, %v209
    %s211 = sld [smem:[#allocation2 + $0xd]]
    %s212 = sld [smem:[#allocation2 + $0x2d]]
    %s213 = sld [smem:[#allocation2 + $0x4d]]
    %v214 = vstv %s211
    %v215 = vmul.f32 %v214, %v67
    %v216 = vstv %s212
    %v217 = vadd.f32 %v215, %v216
    %v218 = vmax.f32 %v217, 0.0
    %v219 = vstv %s213
    %v220 = vmul.f32 %v219, %v218
    %v221 = vadd.f32 %v210, %v220
    %s222 = sld [smem:[#allocation2 + $0xe]]
    %s223 = sld [smem:[#allocation2 + $0x2e]]
    %s224 = sld [smem:[#allocation2 + $0x4e]]
    %v225 = vstv %s222
    %v226 = vmul.f32 %v225, %v67
    %v227 = vstv %s223
    %v228 = vadd.f32 %v226, %v227
    %v229 = vmax.f32 %v228, 0.0
    %v230 = vstv %s224
    %v231 = vmul.f32 %v230, %v229
    %v232 = vadd.f32 %v221, %v231
    %s233 = sld [smem:[#allocation2 + $0xf]]
    %s234 = sld [smem:[#allocation2 + $0x2f]]
    %s235 = sld [smem:[#allocation2 + $0x4f]]
    %v236 = vstv %s233
    %v237 = vmul.f32 %v236, %v67
    %v238 = vstv %s234
    %v239 = vadd.f32 %v237, %v238
    %v240 = vmax.f32 %v239, 0.0
    %v241 = vstv %s235
    %v242 = vmul.f32 %v241, %v240
    %v243 = vadd.f32 %v232, %v242
    %s244 = sld [smem:[#allocation2 + $0x10]]
    %s245 = sld [smem:[#allocation2 + $0x30]]
    %s246 = sld [smem:[#allocation2 + $0x50]]
    %v247 = vstv %s244
    %v248 = vmul.f32 %v247, %v67
    %v249 = vstv %s245
    %v250 = vadd.f32 %v248, %v249
    %v251 = vmax.f32 %v250, 0.0
    %v252 = vstv %s246
    %v253 = vmul.f32 %v252, %v251
    %v254 = vadd.f32 %v243, %v253
    %s255 = sld [smem:[#allocation2 + $0x11]]
    %s256 = sld [smem:[#allocation2 + $0x31]]
    %s257 = sld [smem:[#allocation2 + $0x51]]
    %v258 = vstv %s255
    %v259 = vmul.f32 %v258, %v67
    %v260 = vstv %s256
    %v261 = vadd.f32 %v259, %v260
    %v262 = vmax.f32 %v261, 0.0
    %v263 = vstv %s257
    %v264 = vmul.f32 %v263, %v262
    %v265 = vadd.f32 %v254, %v264
    %s266 = sld [smem:[#allocation2 + $0x12]]
    %s267 = sld [smem:[#allocation2 + $0x32]]
    %s268 = sld [smem:[#allocation2 + $0x52]]
    %v269 = vstv %s266
    %v270 = vmul.f32 %v269, %v67
    %v271 = vstv %s267
    %v272 = vadd.f32 %v270, %v271
    %v273 = vmax.f32 %v272, 0.0
    %v274 = vstv %s268
    %v275 = vmul.f32 %v274, %v273
    %v276 = vadd.f32 %v265, %v275
    %s277 = sld [smem:[#allocation2 + $0x13]]
    %s278 = sld [smem:[#allocation2 + $0x33]]
    %s279 = sld [smem:[#allocation2 + $0x53]]
    %v280 = vstv %s277
    %v281 = vmul.f32 %v280, %v67
    %v282 = vstv %s278
    %v283 = vadd.f32 %v281, %v282
    %v284 = vmax.f32 %v283, 0.0
    %v285 = vstv %s279
    %v286 = vmul.f32 %v285, %v284
    %v287 = vadd.f32 %v276, %v286
    %s288 = sld [smem:[#allocation2 + $0x14]]
    %s289 = sld [smem:[#allocation2 + $0x34]]
    %s290 = sld [smem:[#allocation2 + $0x54]]
    %v291 = vstv %s288
    %v292 = vmul.f32 %v291, %v67
    %v293 = vstv %s289
    %v294 = vadd.f32 %v292, %v293
    %v295 = vmax.f32 %v294, 0.0
    %v296 = vstv %s290
    %v297 = vmul.f32 %v296, %v295
    %v298 = vadd.f32 %v287, %v297
    %s299 = sld [smem:[#allocation2 + $0x15]]
    %s300 = sld [smem:[#allocation2 + $0x35]]
    %s301 = sld [smem:[#allocation2 + $0x55]]
    %v302 = vstv %s299
    %v303 = vmul.f32 %v302, %v67
    %v304 = vstv %s300
    %v305 = vadd.f32 %v303, %v304
    %v306 = vmax.f32 %v305, 0.0
    %v307 = vstv %s301
    %v308 = vmul.f32 %v307, %v306
    %v309 = vadd.f32 %v298, %v308
    %s310 = sld [smem:[#allocation2 + $0x16]]
    %s311 = sld [smem:[#allocation2 + $0x36]]
    %s312 = sld [smem:[#allocation2 + $0x56]]
    %v313 = vstv %s310
    %v314 = vmul.f32 %v313, %v67
    %v315 = vstv %s311
    %v316 = vadd.f32 %v314, %v315
    %v317 = vmax.f32 %v316, 0.0
    %v318 = vstv %s312
    %v319 = vmul.f32 %v318, %v317
    %v320 = vadd.f32 %v309, %v319
    %s321 = sld [smem:[#allocation2 + $0x17]]
    %s322 = sld [smem:[#allocation2 + $0x37]]
    %s323 = sld [smem:[#allocation2 + $0x57]]
    %v324 = vstv %s321
    %v325 = vmul.f32 %v324, %v67
    %v326 = vstv %s322
    %v327 = vadd.f32 %v325, %v326
    %v328 = vmax.f32 %v327, 0.0
    %v329 = vstv %s323
    %v330 = vmul.f32 %v329, %v328
    %v331 = vadd.f32 %v320, %v330
    %s332 = sld [smem:[#allocation2 + $0x18]]
    %s333 = sld [smem:[#allocation2 + $0x38]]
    %s334 = sld [smem:[#allocation2 + $0x58]]
    %v335 = vstv %s332
    %v336 = vmul.f32 %v335, %v67
    %v337 = vstv %s333
    %v338 = vadd.f32 %v336, %v337
    %v339 = vmax.f32 %v338, 0.0
    %v340 = vstv %s334
    %v341 = vmul.f32 %v340, %v339
    %v342 = vadd.f32 %v331, %v341
    %s343 = sld [smem:[#allocation2 + $0x19]]
    %s344 = sld [smem:[#allocation2 + $0x39]]
    %s345 = sld [smem:[#allocation2 + $0x59]]
    %v346 = vstv %s343
    %v347 = vmul.f32 %v346, %v67
    %v348 = vstv %s344
    %v349 = vadd.f32 %v347, %v348
    %v350 = vmax.f32 %v349, 0.0
    %v351 = vstv %s345
    %v352 = vmul.f32 %v351, %v350
    %v353 = vadd.f32 %v342, %v352
    %s354 = sld [smem:[#allocation2 + $0x1a]]
    %s355 = sld [smem:[#allocation2 + $0x3a]]
    %s356 = sld [smem:[#allocation2 + $0x5a]]
    %v357 = vstv %s354
    %v358 = vmul.f32 %v357, %v67
    %v359 = vstv %s355
    %v360 = vadd.f32 %v358, %v359
    %v361 = vmax.f32 %v360, 0.0
    %v362 = vstv %s356
    %v363 = vmul.f32 %v362, %v361
    %v364 = vadd.f32 %v353, %v363
    %s365 = sld [smem:[#allocation2 + $0x1b]]
    %s366 = sld [smem:[#allocation2 + $0x3b]]
    %s367 = sld [smem:[#allocation2 + $0x5b]]
    %v368 = vstv %s365
    %v369 = vmul.f32 %v368, %v67
    %v370 = vstv %s366
    %v371 = vadd.f32 %v369, %v370
    %v372 = vmax.f32 %v371, 0.0
    %v373 = vstv %s367
    %v374 = vmul.f32 %v373, %v372
    %v375 = vadd.f32 %v364, %v374
    %s376 = sld [smem:[#allocation2 + $0x1c]]
    %s377 = sld [smem:[#allocation2 + $0x3c]]
    %s378 = sld [smem:[#allocation2 + $0x5c]]
    %v379 = vstv %s376
    %v380 = vmul.f32 %v379, %v67
    %v381 = vstv %s377
    %v382 = vadd.f32 %v380, %v381
    %v383 = vmax.f32 %v382, 0.0
    %v384 = vstv %s378
    %v385 = vmul.f32 %v384, %v383
    %v386 = vadd.f32 %v375, %v385
    %s387 = sld [smem:[#allocation2 + $0x1d]]
    %s388 = sld [smem:[#allocation2 + $0x3d]]
    %s389 = sld [smem:[#allocation2 + $0x5d]]
    %v390 = vstv %s387
    %v391 = vmul.f32 %v390, %v67
    %v392 = vstv %s388
    %v393 = vadd.f32 %v391, %v392
    %v394 = vmax.f32 %v393, 0.0
    %v395 = vstv %s389
    %v396 = vmul.f32 %v395, %v394
    %v397 = vadd.f32 %v386, %v396
    %s398 = sld [smem:[#allocation2 + $0x1e]]
    %s399 = sld [smem:[#allocation2 + $0x3e]]
    %s400 = sld [smem:[#allocation2 + $0x5e]]
    %v401 = vstv %s398
    %v402 = vmul.f32 %v401, %v67
    %v403 = vstv %s399
    %v404 = vadd.f32 %v402, %v403
    %v405 = vmax.f32 %v404, 0.0
    %v406 = vstv %s400
    %v407 = vmul.f32 %v406, %v405
    %v408 = vadd.f32 %v397, %v407
    %s409 = sld [smem:[#allocation2 + $0x1f]]
    %s410 = sld [smem:[#allocation2 + $0x3f]]
    %s411 = sld [smem:[#allocation2 + $0x5f]]
    %v412 = vstv %s409
    %v413 = vmul.f32 %v412, %v67
    %v414 = vstv %s410
    %v415 = vadd.f32 %v413, %v414
    %v416 = vmax.f32 %v415, 0.0
    %v417 = vstv %s411
    %v418 = vmul.f32 %v417, %v416
    %v419 = vadd.f32 %v408, %v418
    %s420 = sld [smem:[#allocation2 + $0x60]]
    %v421 = vstv %s420
    %v422 = vadd.f32 %v419, %v421
    %v423 = vadd.f32 %v67, 1e-05
    %v424 = vrcp.pop %v423
    %v425 = vmul.f32 %v423, %v424
    %v426 = vsub.f32 2.0, %v425
    %v427 = vmul.f32 %v424, %v426
    %v428 = vmul.f32 %v422, %v427
    %v429 = vmul.f32 %v428, %v55
    %v430 = vmul.f32 %v52, %v429
    %431 = vadd.xlane.f32.xlu0 %v430
    %v432 = vpop.xlane.xlu0 %431
    %v433 = vmul.f32 %v432, 0.125
    %v434 = vsub.f32 %v430, %v433
    %435 = vst [vmem:[#allocation9] sm:$0xff] %v434
    %v436 = vmul.f32 %v53, %v429
    %437 = vadd.xlane.f32.xlu0 %v436
    %v438 = vpop.xlane.xlu0 %437
    %v439 = vmul.f32 %v438, 0.125
    %v440 = vsub.f32 %v436, %v439
    %s441 = scalar_lea.vmem [#allocation9], 8
    %442 = vst [vmem:[%s441] sm:$0xff] %v440
    %v443 = vmul.f32 %v54, %v429
    %444 = vadd.xlane.f32.xlu0 %v443
    %v445 = vpop.xlane.xlu0 %444
    %v446 = vmul.f32 %v445, 0.125
    %v447 = vsub.f32 %v443, %v446
    %s448 = scalar_lea.vmem [#allocation9], 16
    %449 = vst [vmem:[%s448] sm:$0xff] %v447
    // Predicated region
    $region26: #{tpu_custom_call.1} parent=1 // pred_check
      _
    $region27: #{tpu_custom_call.1} parent=1 // pred_check_branch
      %451 = sbr.rel (0) target = $region29
    $region28: #{tpu_custom_call.1} parent=1 // pred_region
      %s453 = ssub.s32 384, 384
      %454 = vsyncadd [#allocation4], %s453
      %s455 = sshll.u32 [#allocation9], 4
      %s456 = int_to_ptr.vmem [resolvable:$true] %s455
      %461 = dma.vmem_to_hbm [thread:$0]  %s456, 384, %s3, [#allocation4], 128, 128, 8
    $region29: #{tpu_custom_call.1} parent=1 // pred_fallthru
      _
    // Predicated region
    $region30: #{tpu_custom_call.1} parent=1 // pred_check
      _
    $region31: #{tpu_custom_call.1} parent=1 // pred_check_branch
      %463 = sbr.rel (0) target = $region33
    $region32: #{tpu_custom_call.1} parent=1 // pred_region
      %464 = dma.done [#allocation4], 384
    $region33: #{tpu_custom_call.1} parent=1 // pred_fallthru
      _
    %465 = vsyncpa [#allocation3], 1
    %466 = vsyncpa [#allocation8], 1
    %467 = vsyncpa [#allocation4], 1
    %468 = vsyncpa [#allocation5], 1

</llo_original>
